<compile_context>
chip_gen: v6e
topology: v6e:2x2x1
jax: 0.10.0
libtpu: 0.0.40
codegen_flags: <defaults>
</compile_context>

<pallas_src>
import math

import jax
import jax.numpy as jnp
from jax.experimental import pallas as pl
from jax.experimental.pallas import tpu as pltpu


def _round_up(x, m):
    return ((x + m - 1) // m) * m


def _cross_network_kernel(x_ref, wt_ref, q_ref, e_ref, b_ref, o_ref):
    # x_ref : (TB, Dp)       streamed batch tile (Dp = pack * input_dim)
    # wt_ref: (Dp, L*pack)   block-diagonal W^T (resident in VMEM, f32)
    # q_ref : (1, L*pack)    q_l = (sum_{j<l} b_j) . w_l, replicated per pack slot
    # e_ref : (pack, Dp)     alpha lane-broadcast matrix (only read if pack > 1)
    # b_ref : (1, Dp)        sum of biases, tiled per pack slot
    pack = e_ref.shape[0]
    num_layers = q_ref.shape[1] // pack

    x0 = x_ref[...].astype(jnp.float32)

    # One small MXU matmul gives every per-row, per-layer dot product at once:
    #   p[:, l*pack + r] = (packed sub-row r of this row) . w_l
    p = jnp.dot(x0, wt_ref[...], preferred_element_type=jnp.float32)
    q = q_ref[...]

    # Collapsed cross-layer recurrence on a (TB, pack)-sized carry.
    # q_0 == 0 always, so alpha after layer 0 is simply P_0 + 1.
    alpha = p[:, 0:pack] + 1.0
    for l in range(1, num_layers):
        alpha = (alpha * (p[:, l * pack:(l + 1) * pack] + 1.0)
                 + q[:, l * pack:(l + 1) * pack])

    if pack > 1:
        # Lane-broadcast alpha (TB, pack) -> (TB, pack*D) via a tiny MXU matmul
        # (avoids lane-shuffle/relayout work on the VPU/XLU).
        alpha = jnp.dot(alpha, e_ref[...], preferred_element_type=jnp.float32)

    # x_L = x0 * alpha_L + sum_l b_l  -- single fused, lane-dense store.
    o_ref[...] = (x0 * alpha + b_ref[...]).astype(o_ref.dtype)


def cross_network(x, w, b, *, block_rows=None, interpret=False):
    """DCN cross layers.

    x: (..., input_dim)  (leading dims are flattened into independent rows);
    w, b: (num_layers, input_dim).
    Accepts f32 or bf16 x; all arithmetic accumulates in f32, output is cast
    back to x.dtype (bf16 I/O halves HBM traffic on the memory-bound path).
    """
    orig_shape = x.shape
    input_dim = orig_shape[-1]
    rows = math.prod(orig_shape[:-1])
    num_layers = w.shape[0]
    if num_layers == 0 or rows == 0:
        return x

    itemsize = jnp.dtype(x.dtype).itemsize

    # ---- precompute tiny per-layer tables (wrapper-side, f32) ---------------
    w32 = w.astype(jnp.float32)
    b32 = b.astype(jnp.float32)
    b_excl = jnp.concatenate(
        [jnp.zeros((1, input_dim), jnp.float32), jnp.cumsum(b32, axis=0)[:-1]],
        axis=0)                                  # exclusive prefix sum of biases
    q = jnp.sum(b_excl * w32, axis=-1)           # (L,)  q_l = (sum_{j<l} b_j).w_l
    b_sum = jnp.sum(b32, axis=0)                 # (D,)

    # ---- lane packing for small input_dim -----------------------------------
    pack = 1
    if input_dim < 128 and 128 % input_dim == 0:
        cand = 128 // input_dim
        if cand > 1 and rows % cand == 0:
            pack = cand                          # free row-major reshape
    dp = pack * input_dim
    rows_p = rows // pack
    x2 = x.reshape(rows_p, dp)

    eye = jnp.eye(pack, dtype=jnp.float32)
    # wt_block[r*D + d, l*pack + r'] = w[l, d] * (r == r')
    wt_block = (eye[:, None, None, :] * w32.T[None, :, :, None]).reshape(
        pack * input_dim, num_layers * pack)
    q_row = jnp.repeat(q, pack)[None, :]         # (1, L*pack)
    e = jnp.repeat(eye, input_dim, axis=1)       # (pack, Dp); unused if pack==1
    b_vec = jnp.tile(b_sum, pack)[None, :]       # (1, Dp)

    # ---- tile selection ------------------------------------------------------
    sublane = max(8, 32 // itemsize)             # 8 for f32, 16 for bf16
    tile_cap_bytes = 4 * 1024 * 1024             # per-array tile cap (review: 4 MiB)
    cap_rows = max(sublane, tile_cap_bytes // max(1, dp * itemsize))
    tb = cap_rows if block_rows is None else min(block_rows, cap_rows)
    if rows_p <= sublane:
        tb = rows_p                              # full-extent block (always legal)
    else:
        tb = max(sublane, (min(tb, rows_p) // sublane) * sublane)
        # Keep >= 2 grid steps when there is enough work so both v7x TCs are fed.
        if rows_p > 2 * sublane and pl.cdiv(rows_p, tb) < 2:
            tb = max(sublane, _round_up(pl.cdiv(rows_p, 2), sublane))
    num_steps = pl.cdiv(rows_p, tb)              # partial tail block handled by Pallas

    # ---- VMEM budget (accurate estimate, capped below v7x's 64 MiB) ---------
    lr = num_layers * pack
    tile_elems = tb * dp
    est = (4 * tile_elems * itemsize                       # in + out, double-buffered
           + 2 * tile_elems * 4                            # f32 x0 + f32 result temps
           + 2 * 4 * (dp * lr + lr + pack * dp + dp)       # resident tables (dbl-buf)
           + (1 << 20))                                    # p/alpha temps + slack
    vmem_limit = int(min(48 * 1024 * 1024, max(int(est * 1.25), 8 * 1024 * 1024)))

    out = pl.pallas_call(
        _cross_network_kernel,
        out_shape=jax.ShapeDtypeStruct((rows_p, dp), x.dtype),
        grid_spec=pltpu.PrefetchScalarGridSpec(
            num_scalar_prefetch=0,
            grid=(num_steps,),
            in_specs=[
                # Streamed, double-buffered batch tiles.
                pl.BlockSpec((tb, dp), lambda i: (i, 0)),
                # Small tables: block index never changes -> resident in VMEM.
                pl.BlockSpec((dp, lr), lambda i: (0, 0)),
                pl.BlockSpec((1, lr), lambda i: (0, 0)),
                pl.BlockSpec((pack, dp), lambda i: (0, 0)),
                pl.BlockSpec((1, dp), lambda i: (0, 0)),
            ],
            out_specs=pl.BlockSpec((tb, dp), lambda i: (i, 0)),
        ),
        compiler_params=pltpu.CompilerParams(
            # Row tiles are independent.
            # TODO(synk): verify "parallel" shards the grid across v7x's 2 TCs;
            # if not, switch this axis to pltpu.CORE_PARALLEL.
            dimension_semantics=("parallel",),
            vmem_limit_bytes=vmem_limit,
        ),
        interpret=interpret,
    )(x2, wt_block, q_row, e, b_vec)

    return out.reshape(orig_shape)


def cross_network_ref(x, w, b):
    """Pure-JAX reference mirroring the PyTorch forward (sequential layers)."""
    x0 = x.astype(jnp.float32)
    xl = x0
    for i in range(w.shape[0]):
        xw = jnp.sum(xl * w[i].astype(jnp.float32), axis=-1, keepdims=True)
        xl = x0 * xw + b[i].astype(jnp.float32) + xl
    return xl.astype(x.dtype)


if __name__ == "__main__":
    key = jax.random.PRNGKey(0)
    num_fields, embed_dim = 4, 8
    input_dim = num_fields * embed_dim          # 32 (flattened DCN input)
    num_layers = 3

    kx, kw, kb, kx2, kx3 = jax.random.split(key, 5)
    # Linear(input_dim, 1, bias=False).weight rows stacked -> (L, D).
    w = jax.random.normal(kw, (num_layers, input_dim), dtype=jnp.float32) * 0.1
    # Bias params are zeros at init; use small random values to exercise the b path.
    b = jax.random.normal(kb, (num_layers, input_dim), dtype=jnp.float32) * 0.1

    # Case 1: lane-packed path (batch divisible by 128 // input_dim = 4).
    x = jax.random.normal(kx, (8, input_dim), dtype=jnp.float32)
    out = jax.block_until_ready(cross_network(x, w, b))
    ref = cross_network_ref(x, w, b)
    assert out.shape == x.shape
    assert jnp.allclose(out, ref, atol=1e-4, rtol=1e-4)

    # Case 2: ragged batch (partial tail grid block, unpacked fallback).
    x2 = jax.random.normal(kx2, (10, input_dim), dtype=jnp.float32)
    out2 = jax.block_until_ready(cross_network(x2, w, b))
    ref2 = cross_network_ref(x2, w, b)
    assert out2.shape == x2.shape
    assert jnp.allclose(out2, ref2, atol=1e-4, rtol=1e-4)

    # Case 3: 3-D input (batch, num_fields, embed_dim) as in the docstring.
    w3 = jax.random.normal(kw, (num_layers, embed_dim), dtype=jnp.float32) * 0.1
    b3 = jax.random.normal(kb, (num_layers, embed_dim), dtype=jnp.float32) * 0.1
    x3 = jax.random.normal(kx3, (2, num_fields, embed_dim), dtype=jnp.float32)
    out3 = jax.block_until_ready(cross_network(x3, w3, b3))
    ref3 = cross_network_ref(x3, w3, b3)
    assert out3.shape == x3.shape
    assert jnp.allclose(out3, ref3, atol=1e-4, rtol=1e-4)

    # Case 4: bf16 streaming path (halves HBM bytes; f32 accumulation inside).
    xb = x.astype(jnp.bfloat16)
    outb = jax.block_until_ready(cross_network(xb, w, b))
    refb = cross_network_ref(xb, w, b)
    assert outb.dtype == jnp.bfloat16
    assert jnp.allclose(outb.astype(jnp.float32), refb.astype(jnp.float32),
                        atol=2e-2, rtol=2e-2)

    print("KERNEL_OK")
</pallas_src>

<mosaic_0001>
module attributes {stable_mosaic.version = 11 : i64} {
  func.func @_cross_network_kernel(%arg0: i32, %arg1: memref<2x128xf32, #tpu.memory_space<vmem>>, %arg2: memref<128x12xf32, #tpu.memory_space<vmem>>, %arg3: memref<1x12xf32, #tpu.memory_space<vmem>>, %arg4: memref<4x128xf32, #tpu.memory_space<vmem>>, %arg5: memref<1x128xf32, #tpu.memory_space<vmem>>, %arg6: memref<2x128xf32, #tpu.memory_space<vmem>>) attributes {dimension_semantics = [#tpu.dimension_semantics<parallel>], iteration_bounds = array<i64: 1>, scalar_prefetch = 0 : i64, scratch_operands = 0 : i64, tpu.core_type = #tpu.core_type<tc>, window_params = [{transform_indices = @transform_0, window_bounds = array<i64: 2, 128>}, {pipeline_mode = #tpu.pipeline_mode<synchronous>, transform_indices = @transform_1, window_bounds = array<i64: 128, 12>}, {pipeline_mode = #tpu.pipeline_mode<synchronous>, transform_indices = @transform_2, window_bounds = array<i64: 1, 12>}, {pipeline_mode = #tpu.pipeline_mode<synchronous>, transform_indices = @transform_3, window_bounds = array<i64: 4, 128>}, {pipeline_mode = #tpu.pipeline_mode<synchronous>, transform_indices = @transform_4, window_bounds = array<i64: 1, 128>}, {transform_indices = @transform_5, window_bounds = array<i64: 2, 128>}]} {
    %c0 = arith.constant 0 : index
    %c0_0 = arith.constant 0 : index
    %0 = vector.load %arg1[%c0, %c0_0] : memref<2x128xf32, #tpu.memory_space<vmem>>, vector<2x128xf32>
    %c0_1 = arith.constant 0 : index
    %c0_2 = arith.constant 0 : index
    %1 = vector.load %arg2[%c0_1, %c0_2] : memref<128x12xf32, #tpu.memory_space<vmem>>, vector<128x12xf32>
    %cst = arith.constant dense<0.000000e+00> : vector<2x12xf32>
    %2 = tpu.matmul %0, %1, %cst {dimension_numbers = #tpu.dot_dimension_numbers<[1], [0], [0], [1], [0, 0, 1, 1], [], []>} : vector<2x128xf32>, vector<128x12xf32>, vector<2x12xf32> -> vector<2x12xf32>
    %c0_3 = arith.constant 0 : index
    %c0_4 = arith.constant 0 : index
    %3 = vector.load %arg3[%c0_3, %c0_4] : memref<1x12xf32, #tpu.memory_space<vmem>>, vector<1x12xf32>
    %4 = vector.extract_strided_slice %2 {offsets = [0, 0], sizes = [2, 4], strides = [1, 1]} : vector<2x12xf32> to vector<2x4xf32>
    %cst_5 = arith.constant 1.000000e+00 : f32
    %5 = vector.broadcast %cst_5 : f32 to vector<2x4xf32>
    %6 = arith.addf %4, %5 : vector<2x4xf32>
    %7 = vector.extract_strided_slice %2 {offsets = [0, 4], sizes = [2, 4], strides = [1, 1]} : vector<2x12xf32> to vector<2x4xf32>
    %cst_6 = arith.constant 1.000000e+00 : f32
    %8 = vector.broadcast %cst_6 : f32 to vector<2x4xf32>
    %9 = arith.addf %7, %8 : vector<2x4xf32>
    %10 = arith.mulf %6, %9 : vector<2x4xf32>
    %11 = vector.extract_strided_slice %3 {offsets = [0, 4], sizes = [1, 4], strides = [1, 1]} : vector<1x12xf32> to vector<1x4xf32>
    %12 = vector.broadcast %11 : vector<1x4xf32> to vector<2x4xf32>
    %13 = arith.addf %10, %12 : vector<2x4xf32>
    %14 = vector.extract_strided_slice %2 {offsets = [0, 8], sizes = [2, 4], strides = [1, 1]} : vector<2x12xf32> to vector<2x4xf32>
    %cst_7 = arith.constant 1.000000e+00 : f32
    %15 = vector.broadcast %cst_7 : f32 to vector<2x4xf32>
    %16 = arith.addf %14, %15 : vector<2x4xf32>
    %17 = arith.mulf %13, %16 : vector<2x4xf32>
    %18 = vector.extract_strided_slice %3 {offsets = [0, 8], sizes = [1, 4], strides = [1, 1]} : vector<1x12xf32> to vector<1x4xf32>
    %19 = vector.broadcast %18 : vector<1x4xf32> to vector<2x4xf32>
    %20 = arith.addf %17, %19 : vector<2x4xf32>
    %c0_8 = arith.constant 0 : index
    %c0_9 = arith.constant 0 : index
    %21 = vector.load %arg4[%c0_8, %c0_9] : memref<4x128xf32, #tpu.memory_space<vmem>>, vector<4x128xf32>
    %cst_10 = arith.constant dense<0.000000e+00> : vector<2x128xf32>
    %22 = tpu.matmul %20, %21, %cst_10 {dimension_numbers = #tpu.dot_dimension_numbers<[1], [0], [0], [1], [0, 0, 1, 1], [], []>} : vector<2x4xf32>, vector<4x128xf32>, vector<2x128xf32> -> vector<2x128xf32>
    %23 = arith.mulf %0, %22 : vector<2x128xf32>
    %c0_11 = arith.constant 0 : index
    %c0_12 = arith.constant 0 : index
    %24 = vector.load %arg5[%c0_11, %c0_12] : memref<1x128xf32, #tpu.memory_space<vmem>>, vector<1x128xf32>
    %25 = vector.broadcast %24 : vector<1x128xf32> to vector<2x128xf32>
    %26 = arith.addf %23, %25 : vector<2x128xf32>
    %c0_13 = arith.constant 0 : index
    %c0_14 = arith.constant 0 : index
    %27 = vector.load %arg6[%c0_13, %c0_14] : memref<2x128xf32, #tpu.memory_space<vmem>>, vector<2x128xf32>
    tpu.vector_store %arg6[%c0_13, %c0_14], %26 {strides = array<i32>} : memref<2x128xf32, #tpu.memory_space<vmem>>, vector<2x128xf32>,
    return
  }
  func.func @transform_0(%arg0: i32) -> (i32, i32) {
    %c0_i32 = arith.constant 0 : i32
    %c0_i32_0 = arith.constant 0 : i32
    return %arg0, %c0_i32 : i32, i32
  }
  func.func @transform_1(%arg0: i32) -> (i32, i32) {
    %c0_i32 = arith.constant 0 : i32
    %c0_i32_0 = arith.constant 0 : i32
    %c0_i32_1 = arith.constant 0 : i32
    return %c0_i32, %c0_i32_0 : i32, i32
  }
  func.func @transform_2(%arg0: i32) -> (i32, i32) {
    %c0_i32 = arith.constant 0 : i32
    %c0_i32_0 = arith.constant 0 : i32
    %c0_i32_1 = arith.constant 0 : i32
    return %c0_i32, %c0_i32_0 : i32, i32
  }
  func.func @transform_3(%arg0: i32) -> (i32, i32) {
    %c0_i32 = arith.constant 0 : i32
    %c0_i32_0 = arith.constant 0 : i32
    %c0_i32_1 = arith.constant 0 : i32
    return %c0_i32, %c0_i32_0 : i32, i32
  }
  func.func @transform_4(%arg0: i32) -> (i32, i32) {
    %c0_i32 = arith.constant 0 : i32
    %c0_i32_0 = arith.constant 0 : i32
    %c0_i32_1 = arith.constant 0 : i32
    return %c0_i32, %c0_i32_0 : i32, i32
  }
  func.func @transform_5(%arg0: i32) -> (i32, i32) {
    %c0_i32 = arith.constant 0 : i32
    %c0_i32_0 = arith.constant 0 : i32
    return %arg0, %c0_i32 : i32, i32
  }
}

</mosaic_0001>

<llo_original>
// kernel: tpu_custom_call.1
$region0: #{tpu_custom_call.1}
  #allocation0 [shape = 'u32[]', space=smem, size = 0x4, offset = 0x4, fixed_abs, tag = 'smem constant byte address 0x4 - core index']
  #allocation1 [shape = 'u32[144,128]{1,0:T(1,128)}', space=vmem, size = 0x12000, scoped, tag = 'internal scratch']
  %s0 = inlined_call_operand.vmem [shape: f32[2,128], index: 0, kind: input, shape index: {}]
  %s1 = inlined_call_operand.vmem [shape: f32[128,12], index: 1, kind: input, shape index: {}]
  %s2 = inlined_call_operand.vmem [shape: f32[1,12], index: 2, kind: input, shape index: {}]
  %s3 = inlined_call_operand.vmem [shape: f32[4,128], index: 3, kind: input, shape index: {}]
  %s4 = inlined_call_operand.vmem [shape: f32[1,128], index: 4, kind: input, shape index: {}]
  %s5 = inlined_call_operand.hbm [shape: f32[2,128], index: 5, kind: output, shape index: {}]
  %s6 = sld [smem:[#allocation0]]
  $region30: #{tpu_custom_call.1} parent=0
    _
  %s8 = ssub.s32 1, %s6
  %s9 = scalar_select 0, %s8, %s6
  $region1: #{tpu_custom_call.1} parent=0
    #allocation2 [shape = 'u8[1024]{0}', space=vmem, size = 0x400, scoped, tag = 'output window, operand 0, single buffered']
    #allocation3 [shape = 's32[1]{0}', space=sflag, size = 0x4, scoped, tag = 'scoped memory for tpu_custom_call.1']
    %10 = vsyncpa [#allocation3], 0
    // Predicated region
    $region2: #{tpu_custom_call.1} parent=1 // pred_check
      _
    $region3: #{tpu_custom_call.1} parent=1 // pred_check_branch
      %12 = sbr.rel (0) target = $region5
    $region4: #{tpu_custom_call.1} parent=1 // pred_region
      _
    $region5: #{tpu_custom_call.1} parent=1 // pred_fallthru
      _
    // Predicated region
    $region6: #{tpu_custom_call.1} parent=1 // pred_check
      _
    $region7: #{tpu_custom_call.1} parent=1 // pred_check_branch
      %14 = sbr.rel (0) target = $region9
    $region8: #{tpu_custom_call.1} parent=1 // pred_region
      _
    $region9: #{tpu_custom_call.1} parent=1 // pred_fallthru
      _
    // Predicated region
    $region10: #{tpu_custom_call.1} parent=1 // pred_check
      _
    $region11: #{tpu_custom_call.1} parent=1 // pred_check_branch
      %16 = sbr.rel (0) target = $region13
    $region12: #{tpu_custom_call.1} parent=1 // pred_region
      _
    $region13: #{tpu_custom_call.1} parent=1 // pred_fallthru
      _
    // Predicated region
    $region14: #{tpu_custom_call.1} parent=1 // pred_check
      _
    $region15: #{tpu_custom_call.1} parent=1 // pred_check_branch
      %18 = sbr.rel (0) target = $region17
    $region16: #{tpu_custom_call.1} parent=1 // pred_region
      _
    $region17: #{tpu_custom_call.1} parent=1 // pred_fallthru
      _
    // Predicated region
    $region18: #{tpu_custom_call.1} parent=1 // pred_check
      _
    $region19: #{tpu_custom_call.1} parent=1 // pred_check_branch
      %20 = sbr.rel (0) target = $region21
    $region20: #{tpu_custom_call.1} parent=1 // pred_region
      _
    $region21: #{tpu_custom_call.1} parent=1 // pred_fallthru
      _
    %v21 = vld [vmem:[%s0] sm:$0x3]
    %v22 = vld [vmem:[%s1] sm:$0xff]
    %v23 = vld [vmem:[%s1 + $0x8] sm:$0xff]
    %v24 = vld [vmem:[%s1 + $0x10] sm:$0xff]
    %v25 = vld [vmem:[%s1 + $0x18] sm:$0xff]
    %v26 = vld [vmem:[%s1 + $0x20] sm:$0xff]
    %v27 = vld [vmem:[%s1 + $0x28] sm:$0xff]
    %v28 = vld [vmem:[%s1 + $0x30] sm:$0xff]
    %v29 = vld [vmem:[%s1 + $0x38] sm:$0xff]
    %v30 = vld [vmem:[%s1 + $0x40] sm:$0xff]
    %v31 = vld [vmem:[%s1 + $0x48] sm:$0xff]
    %v32 = vld [vmem:[%s1 + $0x50] sm:$0xff]
    %v33 = vld [vmem:[%s1 + $0x58] sm:$0xff]
    %v34 = vld [vmem:[%s1 + $0x60] sm:$0xff]
    %v35 = vld [vmem:[%s1 + $0x68] sm:$0xff]
    %v36 = vld [vmem:[%s1 + $0x70] sm:$0xff]
    %v37 = vld [vmem:[%s1 + $0x78] sm:$0xff]
    %38 = vmatprep.subr.mxu0 0.0
    %39 = vmatpush1.msra.mxu0 %v37
    %40 = vmatprep.subr.mxu0 0.0
    %41 = vmatpush1.msra.mxu0 %v36
    %42 = vmatprep.subr.mxu0 0.0
    %43 = vmatpush1.msra.mxu0 %v35
    %44 = vmatprep.subr.mxu0 0.0
    %45 = vmatpush1.msra.mxu0 %v34
    %46 = vmatprep.subr.mxu0 0.0
    %47 = vmatpush1.msra.mxu0 %v33
    %48 = vmatprep.subr.mxu0 0.0
    %49 = vmatpush1.msra.mxu0 %v32
    %50 = vmatprep.subr.mxu0 0.0
    %51 = vmatpush1.msra.mxu0 %v31
    %52 = vmatprep.subr.mxu0 0.0
    %53 = vmatpush1.msra.mxu0 %v30
    %54 = vmatprep.subr.mxu0 0.0
    %55 = vmatpush1.msra.mxu0 %v29
    %56 = vmatprep.subr.mxu0 0.0
    %57 = vmatpush1.msra.mxu0 %v28
    %58 = vmatprep.subr.mxu0 0.0
    %59 = vmatpush1.msra.mxu0 %v27
    %60 = vmatprep.subr.mxu0 0.0
    %61 = vmatpush1.msra.mxu0 %v26
    %62 = vmatprep.subr.mxu0 0.0
    %63 = vmatpush1.msra.mxu0 %v25
    %64 = vmatprep.subr.mxu0 0.0
    %65 = vmatpush1.msra.mxu0 %v24
    %66 = vmatprep.subr.mxu0 0.0
    %67 = vmatpush1.msra.mxu0 %v23
    %68 = vmatprep.subr.mxu0 0.0
    %69 = vmatpush1.msra.mxu0 %v22
    %70 = vmatprep.subr.mxu0 0.0
    %71 = vmatpush2.msra.mxu0 0.0
    %72 = vmatprep.subr.mxu0 0.0
    %73 = vmatpush2.msra.mxu0 0.0
    %74 = vmatprep.subr.mxu0 0.0
    %75 = vmatpush2.msra.mxu0 0.0
    %76 = vmatprep.subr.mxu0 0.0
    %77 = vmatpush2.msra.mxu0 0.0
    %78 = vmatprep.subr.mxu0 0.0
    %79 = vmatpush2.msra.mxu0 0.0
    %80 = vmatprep.subr.mxu0 0.0
    %81 = vmatpush2.msra.mxu0 0.0
    %82 = vmatprep.subr.mxu0 0.0
    %83 = vmatpush2.msra.mxu0 0.0
    %84 = vmatprep.subr.mxu0 0.0
    %85 = vmatpush2.msra.mxu0 0.0
    %86 = vmatprep.subr.mxu0 0.0
    %87 = vmatpush2.msra.mxu0 0.0
    %88 = vmatprep.subr.mxu0 0.0
    %89 = vmatpush2.msra.mxu0 0.0
    %90 = vmatprep.subr.mxu0 0.0
    %91 = vmatpush2.msra.mxu0 0.0
    %92 = vmatprep.subr.mxu0 0.0
    %93 = vmatpush2.msra.mxu0 0.0
    %94 = vmatprep.subr.mxu0 0.0
    %95 = vmatpush2.msra.mxu0 0.0
    %96 = vmatprep.subr.mxu0 0.0
    %97 = vmatpush2.msra.mxu0 0.0
    %98 = vmatprep.subr.mxu0 0.0
    %99 = vmatpush2.msra.mxu0 0.0
    %100 = vmatprep.subr.mxu0 0.0
    %101 = vmatpush2.msra.mxu0 0.0
    %102 = vmatprep.mubr.f32.mxu0 0.0
    %103 = vmatmul.mubr.f32.gmra.mxu0 %v21
    %v104 = vpop.f32.mrf.mxu0
    %v105 = vadd.f32 0.0, %v104
    %v106 = vpop.f32.mrf.mxu0
    %107 = vdwg.mxu0
    %v108 = vld [vmem:[%s2] sm:$0x1]
    %v109 = vadd.f32 %v105, 1.0
    %111 = vrot.lane.b32.xlu0 %v109, 124
    %v112 = vpop.permute.xlu0 %111
    %v114 = vmul.f32 %v109, %v112
    %v116 = vlaneseq
    %v117 = vshrl.u32 %v116, 7
    %v118 = vsub.s32 0, %v117
    %v119 = vrot.slane %v108, %v118
    %120 = vrot.lane.b32.xlu0 %v119, 124
    %v121 = vpop.permute.xlu0 %120
    %v123 = vadd.f32 %v114, %v121
    %124 = vrot.lane.b32.xlu0 %v109, 120
    %v125 = vpop.permute.xlu0 %124
    %v127 = vmul.f32 %v123, %v125
    %128 = vrot.lane.b32.xlu0 %v119, 120
    %v129 = vpop.permute.xlu0 %128
    %v131 = vadd.f32 %v127, %v129
    %v132 = vld [vmem:[%s3] sm:$0xf]
    %vm133 = vcmask 31744
    %v135 = vsel %vm133, %v131, 0
    %vm137 = vcmask 1043456
    %v139 = vsel %vm137, %v132, 0
    %141 = vmatprep.subr.mxu0 0.0
    %142 = vmatpush1.msra.mxu0 0.0
    %143 = vmatprep.subr.mxu0 0.0
    %144 = vmatpush1.msra.mxu0 0.0
    %145 = vmatprep.subr.mxu0 0.0
    %146 = vmatpush1.msra.mxu0 0.0
    %147 = vmatprep.subr.mxu0 0.0
    %148 = vmatpush1.msra.mxu0 0.0
    %149 = vmatprep.subr.mxu0 0.0
    %150 = vmatpush1.msra.mxu0 0.0
    %151 = vmatprep.subr.mxu0 0.0
    %152 = vmatpush1.msra.mxu0 0.0
    %153 = vmatprep.subr.mxu0 0.0
    %154 = vmatpush1.msra.mxu0 0.0
    %155 = vmatprep.subr.mxu0 0.0
    %156 = vmatpush1.msra.mxu0 0.0
    %157 = vmatprep.subr.mxu0 0.0
    %158 = vmatpush1.msra.mxu0 0.0
    %159 = vmatprep.subr.mxu0 0.0
    %160 = vmatpush1.msra.mxu0 0.0
    %161 = vmatprep.subr.mxu0 0.0
    %162 = vmatpush1.msra.mxu0 0.0
    %163 = vmatprep.subr.mxu0 0.0
    %164 = vmatpush1.msra.mxu0 0.0
    %165 = vmatprep.subr.mxu0 0.0
    %166 = vmatpush1.msra.mxu0 0.0
    %167 = vmatprep.subr.mxu0 0.0
    %168 = vmatpush1.msra.mxu0 0.0
    %169 = vmatprep.subr.mxu0 0.0
    %170 = vmatpush1.msra.mxu0 0.0
    %171 = vmatprep.subr.mxu0 0.0
    %172 = vmatpush1.msra.mxu0 %v139
    %173 = vmatprep.subr.mxu0 0.0
    %174 = vmatpush2.msra.mxu0 0.0
    %175 = vmatprep.subr.mxu0 0.0
    %176 = vmatpush2.msra.mxu0 0.0
    %177 = vmatprep.subr.mxu0 0.0
    %178 = vmatpush2.msra.mxu0 0.0
    %179 = vmatprep.subr.mxu0 0.0
    %180 = vmatpush2.msra.mxu0 0.0
    %181 = vmatprep.subr.mxu0 0.0
    %182 = vmatpush2.msra.mxu0 0.0
    %183 = vmatprep.subr.mxu0 0.0
    %184 = vmatpush2.msra.mxu0 0.0
    %185 = vmatprep.subr.mxu0 0.0
    %186 = vmatpush2.msra.mxu0 0.0
    %187 = vmatprep.subr.mxu0 0.0
    %188 = vmatpush2.msra.mxu0 0.0
    %189 = vmatprep.subr.mxu0 0.0
    %190 = vmatpush2.msra.mxu0 0.0
    %191 = vmatprep.subr.mxu0 0.0
    %192 = vmatpush2.msra.mxu0 0.0
    %193 = vmatprep.subr.mxu0 0.0
    %194 = vmatpush2.msra.mxu0 0.0
    %195 = vmatprep.subr.mxu0 0.0
    %196 = vmatpush2.msra.mxu0 0.0
    %197 = vmatprep.subr.mxu0 0.0
    %198 = vmatpush2.msra.mxu0 0.0
    %199 = vmatprep.subr.mxu0 0.0
    %200 = vmatpush2.msra.mxu0 0.0
    %201 = vmatprep.subr.mxu0 0.0
    %202 = vmatpush2.msra.mxu0 0.0
    %203 = vmatprep.subr.mxu0 0.0
    %204 = vmatpush2.msra.mxu0 0.0
    %205 = vmatprep.mubr.f32.mxu0 0.0
    %206 = vmatmul.mubr.f32.gmra.mxu0 %v135
    %v207 = vpop.f32.mrf.mxu0
    %v208 = vadd.f32 0.0, %v207
    %v209 = vpop.f32.mrf.mxu0
    %210 = vdwg.mxu0
    %v211 = vmul.f32 %v21, %v208
    %v212 = vld [vmem:[%s4] sm:$0x1]
    %v214 = vlaneseq
    %v215 = vshrl.u32 %v214, 7
    %v216 = vsub.s32 0, %v215
    %v217 = vrot.slane %v212, %v216
    %v219 = vadd.f32 %v211, %v217
    %220 = vst [vmem:[#allocation2] sm:$0x3] %v219
    // Predicated region
    $region22: #{tpu_custom_call.1} parent=1 // pred_check
      _
    $region23: #{tpu_custom_call.1} parent=1 // pred_check_branch
      %222 = sbr.rel (0) target = $region25
    $region24: #{tpu_custom_call.1} parent=1 // pred_region
      %s224 = ssub.s32 32, 32
      %225 = vsyncadd [#allocation3], %s224
      %s227 = sshll.u32 [#allocation2], 4
      %s228 = int_to_ptr.vmem [resolvable:$true] %s227
      %230 = dma.vmem_to_hbm [thread:$0]  %s228, 32, %s5, [#allocation3]
    $region25: #{tpu_custom_call.1} parent=1 // pred_fallthru
      _
    // Predicated region
    $region26: #{tpu_custom_call.1} parent=1 // pred_check
      _
    $region27: #{tpu_custom_call.1} parent=1 // pred_check_branch
      %232 = sbr.rel (0) target = $region29
    $region28: #{tpu_custom_call.1} parent=1 // pred_region
      %233 = dma.done [#allocation3], 32
    $region29: #{tpu_custom_call.1} parent=1 // pred_fallthru
      _
    %234 = vsyncpa [#allocation3], 1

</llo_original>
